<compile_context>
chip_gen: v5e
topology: v5e:2x2
jax: 0.10.0
libtpu: 0.0.40
codegen_flags: <defaults>
</compile_context>

<pallas_src>
import functools

import jax
import jax.numpy as jnp
from jax.experimental import pallas as pl
from jax.experimental.pallas import tpu as pltpu

_LANE = 128                   # TPU lane width (last-dim tile)
_SUBLANE = 8                  # TPU sublane tile
_DEFAULT_BLOCK_ROWS = 8192    # rows of x per grid step; multiple of 8*128


def _round_up(n: int, m: int) -> int:
    return ((n + m - 1) // m) * m


def _linear_sigmoid_kernel(x_ref, w_ref, o_ref):
    # x_ref: [G, 128, F]   (G = tile_rows // 128, F = in_features)
    # w_ref: [1, F]        resident weight row (same block every grid step)
    # o_ref: [G, 128]      lane-dense output block
    x = x_ref[...]
    w = w_ref[...]                                # [1, F] broadcasts over x
    y = jnp.sum(x * w, axis=-1)                   # VPU mul + XLU lane reduce -> [G, 128]
    # Sigmoid decomposed: exp on the EUP, exact divide for bit-level accuracy.
    o_ref[...] = (1.0 / (1.0 + jnp.exp(-y))).astype(o_ref.dtype)


@functools.partial(jax.jit, static_argnames=("block_rows",))
def single_module_forward(x, w, *, block_rows: int = _DEFAULT_BLOCK_ROWS):
    """sigmoid(x @ w.T) for x: [B, F], w: [1, F] (PyTorch nn.Linear weight layout)."""
    B, F = x.shape
    assert w.shape == (1, F)
    assert block_rows % (_SUBLANE * _LANE) == 0

    # Tile size: at most block_rows, at least one 128-row lane group.  If the
    # whole (128-padded) batch fits in one tile, the block dims equal the full
    # array dims, so the (8,128) rule holds either way.
    tb = min(block_rows, _round_up(B, _LANE))
    b_pad = _round_up(B, tb)
    if b_pad != B:
        x = jnp.pad(x, ((0, b_pad - B), (0, 0)))   # zero tail, sliced off below

    g = tb // _LANE                                # 128-row groups per tile
    n_tiles = b_pad // tb
    x3 = x.reshape(b_pad // _LANE, _LANE, F)       # row-major: layout-free reshape

    out = pl.pallas_call(
        _linear_sigmoid_kernel,
        out_shape=jax.ShapeDtypeStruct((b_pad // _LANE, _LANE), jnp.float32),
        grid=(n_tiles,),
        in_specs=[
            pl.BlockSpec((g, _LANE, F), lambda i: (i, 0, 0)),   # x tile (pipelined)
            pl.BlockSpec((1, F), lambda i: (0, 0)),             # weight, resident
        ],
        out_specs=pl.BlockSpec((g, _LANE), lambda i: (i, 0)),    # lane-dense output
        compiler_params=pltpu.CompilerParams(
            dimension_semantics=("parallel",),   # shard batch tiles across TCs (v7x)
        ),
    )(x3, w)

    return out.reshape(b_pad, 1)[:B]


if __name__ == "__main__":
    key = jax.random.PRNGKey(0)
    k_x, k_w, k_x2 = jax.random.split(key, 3)

    IN_FEATURES = 50

    # nn.Linear default init: U(-1/sqrt(in_features), 1/sqrt(in_features)).
    bound = 1.0 / (IN_FEATURES ** 0.5)
    w = jax.random.uniform(k_w, (1, IN_FEATURES), jnp.float32,
                           minval=-bound, maxval=bound)

    def reference(x):
        return jax.nn.sigmoid(x @ w.T)

    # Small-shape run (single tile; block == full array dims).
    x_small = jax.random.normal(k_x, (8, IN_FEATURES), jnp.float32)
    out_small = jax.block_until_ready(single_module_forward(x_small, w))
    assert out_small.shape == (8, 1)
    assert jnp.allclose(out_small, reference(x_small), atol=1e-5, rtol=1e-5)

    # Multi-tile run (exercises the batch grid, tail padding and pipelining).
    x_big = jax.random.normal(k_x2, (3000, IN_FEATURES), jnp.float32)
    out_big = jax.block_until_ready(
        single_module_forward(x_big, w, block_rows=1024))
    assert out_big.shape == (3000, 1)
    assert jnp.allclose(out_big, reference(x_big), atol=1e-5, rtol=1e-5)

    print("KERNEL_OK")
</pallas_src>

<mosaic_0001>
module attributes {stable_mosaic.version = 11 : i64} {
  func.func @_linear_sigmoid_kernel(%arg0: i32, %arg1: memref<1x128x50xf32, #tpu.memory_space<vmem>>, %arg2: memref<1x50xf32, #tpu.memory_space<vmem>>, %arg3: memref<1x128xf32, #tpu.memory_space<vmem>>) attributes {dimension_semantics = [#tpu.dimension_semantics<parallel>], iteration_bounds = array<i64: 1>, scalar_prefetch = 0 : i64, scratch_operands = 0 : i64, tpu.core_type = #tpu.core_type<tc>, window_params = [{transform_indices = @transform_0, window_bounds = array<i64: 1, 128, 50>}, {pipeline_mode = #tpu.pipeline_mode<synchronous>, transform_indices = @transform_1, window_bounds = array<i64: 1, 50>}, {transform_indices = @transform_2, window_bounds = array<i64: 1, 128>}]} {
    %c0 = arith.constant 0 : index
    %c0_0 = arith.constant 0 : index
    %c0_1 = arith.constant 0 : index
    %0 = vector.load %arg1[%c0, %c0_0, %c0_1] : memref<1x128x50xf32, #tpu.memory_space<vmem>>, vector<1x128x50xf32>
    %c0_2 = arith.constant 0 : index
    %c0_3 = arith.constant 0 : index
    %1 = vector.load %arg2[%c0_2, %c0_3] : memref<1x50xf32, #tpu.memory_space<vmem>>, vector<1x50xf32>
    %2 = vector.shape_cast %1 : vector<1x50xf32> to vector<1x1x50xf32>
    %3 = vector.broadcast %2 : vector<1x1x50xf32> to vector<1x128x50xf32>
    %4 = arith.mulf %0, %3 : vector<1x128x50xf32>
    %cst = arith.constant dense<0.000000e+00> : vector<1x128xf32>
    %5 = vector.multi_reduction <add>, %4, %cst [2] : vector<1x128x50xf32> to vector<1x128xf32>
    %cst_4 = arith.constant 0.000000e+00 : f32
    %6 = vector.broadcast %cst_4 : f32 to vector<1x128xf32>
    %7 = arith.subf %6, %5 : vector<1x128xf32>
    %8 = math.exp %7 : vector<1x128xf32>
    %cst_5 = arith.constant 1.000000e+00 : f32
    %9 = vector.broadcast %cst_5 : f32 to vector<1x128xf32>
    %10 = arith.addf %9, %8 : vector<1x128xf32>
    %cst_6 = arith.constant 1.000000e+00 : f32
    %11 = vector.broadcast %cst_6 : f32 to vector<1x128xf32>
    %12 = arith.divf %11, %10 : vector<1x128xf32>
    %c0_7 = arith.constant 0 : index
    %c0_8 = arith.constant 0 : index
    %13 = vector.load %arg3[%c0_7, %c0_8] : memref<1x128xf32, #tpu.memory_space<vmem>>, vector<1x128xf32>
    tpu.vector_store %arg3[%c0_7, %c0_8], %12 {strides = array<i32>} : memref<1x128xf32, #tpu.memory_space<vmem>>, vector<1x128xf32>,
    return
  }
  func.func @transform_0(%arg0: i32) -> (i32, i32, i32) {
    %c0_i32 = arith.constant 0 : i32
    %c0_i32_0 = arith.constant 0 : i32
    %c0_i32_1 = arith.constant 0 : i32
    return %arg0, %c0_i32, %c0_i32_0 : i32, i32, i32
  }
  func.func @transform_1(%arg0: i32) -> (i32, i32) {
    %c0_i32 = arith.constant 0 : i32
    %c0_i32_0 = arith.constant 0 : i32
    %c0_i32_1 = arith.constant 0 : i32
    return %c0_i32, %c0_i32_0 : i32, i32
  }
  func.func @transform_2(%arg0: i32) -> (i32, i32) {
    %c0_i32 = arith.constant 0 : i32
    %c0_i32_0 = arith.constant 0 : i32
    return %arg0, %c0_i32 : i32, i32
  }
}

</mosaic_0001>

<llo_original>
// kernel: single_module_forward.1
$region0: #{single_module_forward.1}
  #allocation0 [shape = 'u32[]', space=smem, size = 0x4, offset = 0x4, fixed_abs, tag = 'smem constant byte address 0x4 - core index']
  #allocation1 [shape = 'u32[72,128]{1,0:T(1,128)}', space=vmem, size = 0x9000, scoped, tag = 'internal scratch']
  %s0 = inlined_call_operand.vmem [shape: f32[1,128,50], index: 0, kind: input, shape index: {}]
  %s1 = inlined_call_operand.vmem [shape: f32[1,50], index: 1, kind: input, shape index: {}]
  %s2 = inlined_call_operand.vmem [shape: f32[1,128], index: 2, kind: output, shape index: {}]
  %s3 = sld [smem:[#allocation0]]
  $region18: #{single_module_forward.1} parent=0
    _
  %s5 = ssub.s32 1, %s3
  %s6 = scalar_select 0, %s5, %s3
  // Predicated region
  $region2: #{single_module_forward.1} parent=0 // pred_check
    _
  $region3: #{single_module_forward.1} parent=0 // pred_check_branch
    %8 = sbr.rel (0) target = $region5
  $region4: #{single_module_forward.1} parent=0 // pred_region
    _
  $region5: #{single_module_forward.1} parent=0 // pred_fallthru
    _
  // Predicated region
  $region6: #{single_module_forward.1} parent=0 // pred_check
    _
  $region7: #{single_module_forward.1} parent=0 // pred_check_branch
    %10 = sbr.rel (0) target = $region9
  $region8: #{single_module_forward.1} parent=0 // pred_region
    _
  $region9: #{single_module_forward.1} parent=0 // pred_fallthru
    _
  %v11 = vld [vmem:[%s0] sm:$0xff]
  %v12 = vld [vmem:[%s0 + $0x8] sm:$0xff]
  %v13 = vld [vmem:[%s0 + $0x10] sm:$0xff]
  %v14 = vld [vmem:[%s0 + $0x18] sm:$0xff]
  %v15 = vld [vmem:[%s0 + $0x20] sm:$0xff]
  %v16 = vld [vmem:[%s0 + $0x28] sm:$0xff]
  %v17 = vld [vmem:[%s0 + $0x30] sm:$0xff]
  %v18 = vld [vmem:[%s0 + $0x38] sm:$0xff]
  %v19 = vld [vmem:[%s0 + $0x40] sm:$0xff]
  %v20 = vld [vmem:[%s0 + $0x48] sm:$0xff]
  %v21 = vld [vmem:[%s0 + $0x50] sm:$0xff]
  %v22 = vld [vmem:[%s0 + $0x58] sm:$0xff]
  %v23 = vld [vmem:[%s0 + $0x60] sm:$0xff]
  %v24 = vld [vmem:[%s0 + $0x68] sm:$0xff]
  %v25 = vld [vmem:[%s0 + $0x70] sm:$0xff]
  %v26 = vld [vmem:[%s0 + $0x78] sm:$0xff]
  %v27 = vld [vmem:[%s1] sm:$0x1]
  %v29 = vperm.slane %v27, 0
  %v31 = vmul.f32 %v11, %v29
  %v32 = vmul.f32 %v12, %v29
  %v33 = vmul.f32 %v13, %v29
  %v34 = vmul.f32 %v14, %v29
  %v35 = vmul.f32 %v15, %v29
  %v36 = vmul.f32 %v16, %v29
  %v37 = vmul.f32 %v17, %v29
  %v38 = vmul.f32 %v18, %v29
  %v39 = vmul.f32 %v19, %v29
  %v40 = vmul.f32 %v20, %v29
  %v41 = vmul.f32 %v21, %v29
  %v42 = vmul.f32 %v22, %v29
  %v43 = vmul.f32 %v23, %v29
  %v44 = vmul.f32 %v24, %v29
  %v45 = vmul.f32 %v25, %v29
  %v46 = vmul.f32 %v26, %v29
  %vm47 = vcmask 408576
  %v48 = vsel %vm47, %v31, 0.0
  %49 = vadd.xlane.f32.xlu0 %v48
  %v50 = vpop.xlane.xlu0 %49
  %v51 = vsel %vm47, %v32, 0.0
  %52 = vadd.xlane.f32.xlu0 %v51
  %v53 = vpop.xlane.xlu0 %52
  %v54 = vsel %vm47, %v33, 0.0
  %55 = vadd.xlane.f32.xlu0 %v54
  %v56 = vpop.xlane.xlu0 %55
  %v57 = vsel %vm47, %v34, 0.0
  %58 = vadd.xlane.f32.xlu0 %v57
  %v59 = vpop.xlane.xlu0 %58
  %v60 = vsel %vm47, %v35, 0.0
  %61 = vadd.xlane.f32.xlu0 %v60
  %v62 = vpop.xlane.xlu0 %61
  %v63 = vsel %vm47, %v36, 0.0
  %64 = vadd.xlane.f32.xlu0 %v63
  %v65 = vpop.xlane.xlu0 %64
  %v66 = vsel %vm47, %v37, 0.0
  %67 = vadd.xlane.f32.xlu0 %v66
  %v68 = vpop.xlane.xlu0 %67
  %v69 = vsel %vm47, %v38, 0.0
  %70 = vadd.xlane.f32.xlu0 %v69
  %v71 = vpop.xlane.xlu0 %70
  %v72 = vsel %vm47, %v39, 0.0
  %73 = vadd.xlane.f32.xlu0 %v72
  %v74 = vpop.xlane.xlu0 %73
  %v75 = vsel %vm47, %v40, 0.0
  %76 = vadd.xlane.f32.xlu0 %v75
  %v77 = vpop.xlane.xlu0 %76
  %v78 = vsel %vm47, %v41, 0.0
  %79 = vadd.xlane.f32.xlu0 %v78
  %v80 = vpop.xlane.xlu0 %79
  %v81 = vsel %vm47, %v42, 0.0
  %82 = vadd.xlane.f32.xlu0 %v81
  %v83 = vpop.xlane.xlu0 %82
  %v84 = vsel %vm47, %v43, 0.0
  %85 = vadd.xlane.f32.xlu0 %v84
  %v86 = vpop.xlane.xlu0 %85
  %v87 = vsel %vm47, %v44, 0.0
  %88 = vadd.xlane.f32.xlu0 %v87
  %v89 = vpop.xlane.xlu0 %88
  %v90 = vsel %vm47, %v45, 0.0
  %91 = vadd.xlane.f32.xlu0 %v90
  %v92 = vpop.xlane.xlu0 %91
  %v93 = vsel %vm47, %v46, 0.0
  %94 = vadd.xlane.f32.xlu0 %v93
  %v95 = vpop.xlane.xlu0 %94
  %v96 = vsub.f32 0.0, %v50
  %v97 = vsub.f32 0.0, %v53
  %v98 = vsub.f32 0.0, %v56
  %v99 = vsub.f32 0.0, %v59
  %v100 = vsub.f32 0.0, %v62
  %v101 = vsub.f32 0.0, %v65
  %v102 = vsub.f32 0.0, %v68
  %v103 = vsub.f32 0.0, %v71
  %v104 = vsub.f32 0.0, %v74
  %v105 = vsub.f32 0.0, %v77
  %v106 = vsub.f32 0.0, %v80
  %v107 = vsub.f32 0.0, %v83
  %v108 = vsub.f32 0.0, %v86
  %v109 = vsub.f32 0.0, %v89
  %v110 = vsub.f32 0.0, %v92
  %v111 = vsub.f32 0.0, %v95
  %v112 = vmul.f32 %v96, 1.442695
  %v113 = vpow.pop %v112
  %v114 = vmul.f32 %v97, 1.442695
  %v115 = vpow.pop %v114
  %v116 = vmul.f32 %v98, 1.442695
  %v117 = vpow.pop %v116
  %v118 = vmul.f32 %v99, 1.442695
  %v119 = vpow.pop %v118
  %v120 = vmul.f32 %v100, 1.442695
  %v121 = vpow.pop %v120
  %v122 = vmul.f32 %v101, 1.442695
  %v123 = vpow.pop %v122
  %v124 = vmul.f32 %v102, 1.442695
  %v125 = vpow.pop %v124
  %v126 = vmul.f32 %v103, 1.442695
  %v127 = vpow.pop %v126
  %v128 = vmul.f32 %v104, 1.442695
  %v129 = vpow.pop %v128
  %v130 = vmul.f32 %v105, 1.442695
  %v131 = vpow.pop %v130
  %v132 = vmul.f32 %v106, 1.442695
  %v133 = vpow.pop %v132
  %v134 = vmul.f32 %v107, 1.442695
  %v135 = vpow.pop %v134
  %v136 = vmul.f32 %v108, 1.442695
  %v137 = vpow.pop %v136
  %v138 = vmul.f32 %v109, 1.442695
  %v139 = vpow.pop %v138
  %v140 = vmul.f32 %v110, 1.442695
  %v141 = vpow.pop %v140
  %v142 = vmul.f32 %v111, 1.442695
  %v143 = vpow.pop %v142
  %v144 = vadd.f32 %v113, 1.0
  %v145 = vadd.f32 %v115, 1.0
  %v146 = vadd.f32 %v117, 1.0
  %v147 = vadd.f32 %v119, 1.0
  %v148 = vadd.f32 %v121, 1.0
  %v149 = vadd.f32 %v123, 1.0
  %v150 = vadd.f32 %v125, 1.0
  %v151 = vadd.f32 %v127, 1.0
  %v152 = vadd.f32 %v129, 1.0
  %v153 = vadd.f32 %v131, 1.0
  %v154 = vadd.f32 %v133, 1.0
  %v155 = vadd.f32 %v135, 1.0
  %v156 = vadd.f32 %v137, 1.0
  %v157 = vadd.f32 %v139, 1.0
  %v158 = vadd.f32 %v141, 1.0
  %v159 = vadd.f32 %v143, 1.0
  %v160 = vrcp.pop %v144
  %v161 = vmul.f32 %v144, %v160
  %v162 = vsub.f32 1.0, %v161
  %v163 = vmul.f32 %v160, %v162
  %v164 = vadd.f32 %v160, %v163
  %vm165 = vweird.f32 %v144
  %vm166 = vweird.f32 %v160
  %vm167 = vmor %vm165, %vm166
  %v168 = vsel %vm167, %v160, %v164
  %v169 = vand.u32 2147483647, %v144
  %vm170 = vcmp.eq.f32.partialorder %v169, 8.507059e+37
  %v171 = vand.u32 %v144, 2147483648
  %v172 = vor.u32 1.1754944e-38, %v171
  %v173 = vsel %vm170, %v172, %v168
  %v174 = vmul.f32 1.0, %v173
  %v175 = vrcp.pop %v145
  %v176 = vmul.f32 %v145, %v175
  %v177 = vsub.f32 1.0, %v176
  %v178 = vmul.f32 %v175, %v177
  %v179 = vadd.f32 %v175, %v178
  %vm180 = vweird.f32 %v145
  %vm181 = vweird.f32 %v175
  %vm182 = vmor %vm180, %vm181
  %v183 = vsel %vm182, %v175, %v179
  %v184 = vand.u32 2147483647, %v145
  %vm185 = vcmp.eq.f32.partialorder %v184, 8.507059e+37
  %v186 = vand.u32 %v145, 2147483648
  %v187 = vor.u32 1.1754944e-38, %v186
  %v188 = vsel %vm185, %v187, %v183
  %v189 = vmul.f32 1.0, %v188
  %v190 = vrcp.pop %v146
  %v191 = vmul.f32 %v146, %v190
  %v192 = vsub.f32 1.0, %v191
  %v193 = vmul.f32 %v190, %v192
  %v194 = vadd.f32 %v190, %v193
  %vm195 = vweird.f32 %v146
  %vm196 = vweird.f32 %v190
  %vm197 = vmor %vm195, %vm196
  %v198 = vsel %vm197, %v190, %v194
  %v199 = vand.u32 2147483647, %v146
  %vm200 = vcmp.eq.f32.partialorder %v199, 8.507059e+37
  %v201 = vand.u32 %v146, 2147483648
  %v202 = vor.u32 1.1754944e-38, %v201
  %v203 = vsel %vm200, %v202, %v198
  %v204 = vmul.f32 1.0, %v203
  %v205 = vrcp.pop %v147
  %v206 = vmul.f32 %v147, %v205
  %v207 = vsub.f32 1.0, %v206
  %v208 = vmul.f32 %v205, %v207
  %v209 = vadd.f32 %v205, %v208
  %vm210 = vweird.f32 %v147
  %vm211 = vweird.f32 %v205
  %vm212 = vmor %vm210, %vm211
  %v213 = vsel %vm212, %v205, %v209
  %v214 = vand.u32 2147483647, %v147
  %vm215 = vcmp.eq.f32.partialorder %v214, 8.507059e+37
  %v216 = vand.u32 %v147, 2147483648
  %v217 = vor.u32 1.1754944e-38, %v216
  %v218 = vsel %vm215, %v217, %v213
  %v219 = vmul.f32 1.0, %v218
  %v220 = vrcp.pop %v148
  %v221 = vmul.f32 %v148, %v220
  %v222 = vsub.f32 1.0, %v221
  %v223 = vmul.f32 %v220, %v222
  %v224 = vadd.f32 %v220, %v223
  %vm225 = vweird.f32 %v148
  %vm226 = vweird.f32 %v220
  %vm227 = vmor %vm225, %vm226
  %v228 = vsel %vm227, %v220, %v224
  %v229 = vand.u32 2147483647, %v148
  %vm230 = vcmp.eq.f32.partialorder %v229, 8.507059e+37
  %v231 = vand.u32 %v148, 2147483648
  %v232 = vor.u32 1.1754944e-38, %v231
  %v233 = vsel %vm230, %v232, %v228
  %v234 = vmul.f32 1.0, %v233
  %v235 = vrcp.pop %v149
  %v236 = vmul.f32 %v149, %v235
  %v237 = vsub.f32 1.0, %v236
  %v238 = vmul.f32 %v235, %v237
  %v239 = vadd.f32 %v235, %v238
  %vm240 = vweird.f32 %v149
  %vm241 = vweird.f32 %v235
  %vm242 = vmor %vm240, %vm241
  %v243 = vsel %vm242, %v235, %v239
  %v244 = vand.u32 2147483647, %v149
  %vm245 = vcmp.eq.f32.partialorder %v244, 8.507059e+37
  %v246 = vand.u32 %v149, 2147483648
  %v247 = vor.u32 1.1754944e-38, %v246
  %v248 = vsel %vm245, %v247, %v243
  %v249 = vmul.f32 1.0, %v248
  %v250 = vrcp.pop %v150
  %v251 = vmul.f32 %v150, %v250
  %v252 = vsub.f32 1.0, %v251
  %v253 = vmul.f32 %v250, %v252
  %v254 = vadd.f32 %v250, %v253
  %vm255 = vweird.f32 %v150
  %vm256 = vweird.f32 %v250
  %vm257 = vmor %vm255, %vm256
  %v258 = vsel %vm257, %v250, %v254
  %v259 = vand.u32 2147483647, %v150
  %vm260 = vcmp.eq.f32.partialorder %v259, 8.507059e+37
  %v261 = vand.u32 %v150, 2147483648
  %v262 = vor.u32 1.1754944e-38, %v261
  %v263 = vsel %vm260, %v262, %v258
  %v264 = vmul.f32 1.0, %v263
  %v265 = vrcp.pop %v151
  %v266 = vmul.f32 %v151, %v265
  %v267 = vsub.f32 1.0, %v266
  %v268 = vmul.f32 %v265, %v267
  %v269 = vadd.f32 %v265, %v268
  %vm270 = vweird.f32 %v151
  %vm271 = vweird.f32 %v265
  %vm272 = vmor %vm270, %vm271
  %v273 = vsel %vm272, %v265, %v269
  %v274 = vand.u32 2147483647, %v151
  %vm275 = vcmp.eq.f32.partialorder %v274, 8.507059e+37
  %v276 = vand.u32 %v151, 2147483648
  %v277 = vor.u32 1.1754944e-38, %v276
  %v278 = vsel %vm275, %v277, %v273
  %v279 = vmul.f32 1.0, %v278
  %v280 = vrcp.pop %v152
  %v281 = vmul.f32 %v152, %v280
  %v282 = vsub.f32 1.0, %v281
  %v283 = vmul.f32 %v280, %v282
  %v284 = vadd.f32 %v280, %v283
  %vm285 = vweird.f32 %v152
  %vm286 = vweird.f32 %v280
  %vm287 = vmor %vm285, %vm286
  %v288 = vsel %vm287, %v280, %v284
  %v289 = vand.u32 2147483647, %v152
  %vm290 = vcmp.eq.f32.partialorder %v289, 8.507059e+37
  %v291 = vand.u32 %v152, 2147483648
  %v292 = vor.u32 1.1754944e-38, %v291
  %v293 = vsel %vm290, %v292, %v288
  %v294 = vmul.f32 1.0, %v293
  %v295 = vrcp.pop %v153
  %v296 = vmul.f32 %v153, %v295
  %v297 = vsub.f32 1.0, %v296
  %v298 = vmul.f32 %v295, %v297
  %v299 = vadd.f32 %v295, %v298
  %vm300 = vweird.f32 %v153
  %vm301 = vweird.f32 %v295
  %vm302 = vmor %vm300, %vm301
  %v303 = vsel %vm302, %v295, %v299
  %v304 = vand.u32 2147483647, %v153
  %vm305 = vcmp.eq.f32.partialorder %v304, 8.507059e+37
  %v306 = vand.u32 %v153, 2147483648
  %v307 = vor.u32 1.1754944e-38, %v306
  %v308 = vsel %vm305, %v307, %v303
  %v309 = vmul.f32 1.0, %v308
  %v310 = vrcp.pop %v154
  %v311 = vmul.f32 %v154, %v310
  %v312 = vsub.f32 1.0, %v311
  %v313 = vmul.f32 %v310, %v312
  %v314 = vadd.f32 %v310, %v313
  %vm315 = vweird.f32 %v154
  %vm316 = vweird.f32 %v310
  %vm317 = vmor %vm315, %vm316
  %v318 = vsel %vm317, %v310, %v314
  %v319 = vand.u32 2147483647, %v154
  %vm320 = vcmp.eq.f32.partialorder %v319, 8.507059e+37
  %v321 = vand.u32 %v154, 2147483648
  %v322 = vor.u32 1.1754944e-38, %v321
  %v323 = vsel %vm320, %v322, %v318
  %v324 = vmul.f32 1.0, %v323
  %v325 = vrcp.pop %v155
  %v326 = vmul.f32 %v155, %v325
  %v327 = vsub.f32 1.0, %v326
  %v328 = vmul.f32 %v325, %v327
  %v329 = vadd.f32 %v325, %v328
  %vm330 = vweird.f32 %v155
  %vm331 = vweird.f32 %v325
  %vm332 = vmor %vm330, %vm331
  %v333 = vsel %vm332, %v325, %v329
  %v334 = vand.u32 2147483647, %v155
  %vm335 = vcmp.eq.f32.partialorder %v334, 8.507059e+37
  %v336 = vand.u32 %v155, 2147483648
  %v337 = vor.u32 1.1754944e-38, %v336
  %v338 = vsel %vm335, %v337, %v333
  %v339 = vmul.f32 1.0, %v338
  %v340 = vrcp.pop %v156
  %v341 = vmul.f32 %v156, %v340
  %v342 = vsub.f32 1.0, %v341
  %v343 = vmul.f32 %v340, %v342
  %v344 = vadd.f32 %v340, %v343
  %vm345 = vweird.f32 %v156
  %vm346 = vweird.f32 %v340
  %vm347 = vmor %vm345, %vm346
  %v348 = vsel %vm347, %v340, %v344
  %v349 = vand.u32 2147483647, %v156
  %vm350 = vcmp.eq.f32.partialorder %v349, 8.507059e+37
  %v351 = vand.u32 %v156, 2147483648
  %v352 = vor.u32 1.1754944e-38, %v351
  %v353 = vsel %vm350, %v352, %v348
  %v354 = vmul.f32 1.0, %v353
  %v355 = vrcp.pop %v157
  %v356 = vmul.f32 %v157, %v355
  %v357 = vsub.f32 1.0, %v356
  %v358 = vmul.f32 %v355, %v357
  %v359 = vadd.f32 %v355, %v358
  %vm360 = vweird.f32 %v157
  %vm361 = vweird.f32 %v355
  %vm362 = vmor %vm360, %vm361
  %v363 = vsel %vm362, %v355, %v359
  %v364 = vand.u32 2147483647, %v157
  %vm365 = vcmp.eq.f32.partialorder %v364, 8.507059e+37
  %v366 = vand.u32 %v157, 2147483648
  %v367 = vor.u32 1.1754944e-38, %v366
  %v368 = vsel %vm365, %v367, %v363
  %v369 = vmul.f32 1.0, %v368
  %v370 = vrcp.pop %v158
  %v371 = vmul.f32 %v158, %v370
  %v372 = vsub.f32 1.0, %v371
  %v373 = vmul.f32 %v370, %v372
  %v374 = vadd.f32 %v370, %v373
  %vm375 = vweird.f32 %v158
  %vm376 = vweird.f32 %v370
  %vm377 = vmor %vm375, %vm376
  %v378 = vsel %vm377, %v370, %v374
  %v379 = vand.u32 2147483647, %v158
  %vm380 = vcmp.eq.f32.partialorder %v379, 8.507059e+37
  %v381 = vand.u32 %v158, 2147483648
  %v382 = vor.u32 1.1754944e-38, %v381
  %v383 = vsel %vm380, %v382, %v378
  %v384 = vmul.f32 1.0, %v383
  %v385 = vrcp.pop %v159
  %v386 = vmul.f32 %v159, %v385
  %v387 = vsub.f32 1.0, %v386
  %v388 = vmul.f32 %v385, %v387
  %v389 = vadd.f32 %v385, %v388
  %vm390 = vweird.f32 %v159
  %vm391 = vweird.f32 %v385
  %vm392 = vmor %vm390, %vm391
  %v393 = vsel %vm392, %v385, %v389
  %v394 = vand.u32 2147483647, %v159
  %vm395 = vcmp.eq.f32.partialorder %v394, 8.507059e+37
  %v396 = vand.u32 %v159, 2147483648
  %v397 = vor.u32 1.1754944e-38, %v396
  %v398 = vsel %vm395, %v397, %v393
  %v399 = vmul.f32 1.0, %v398
  %v416 = vlaneseq
  %v417 = vand.u32 %v416, 127
  %v418 = vperm.slane %v174, %v417
  %v419 = vadd.s32 %v417, 4294967288
  %v420 = vperm.slane %v189, %v419
  %vm421 = vcmask 130112
  %v422 = vsel %vm421, %v420, %v418
  %v423 = vadd.s32 %v417, 4294967280
  %v424 = vperm.slane %v204, %v423
  %vm425 = vcmask 195712
  %v426 = vsel %vm425, %v424, %v422
  %v427 = vadd.s32 %v417, 4294967272
  %v428 = vperm.slane %v219, %v427
  %vm429 = vcmask 261312
  %v430 = vsel %vm429, %v428, %v426
  %v431 = vadd.s32 %v417, 4294967264
  %v432 = vperm.slane %v234, %v431
  %vm433 = vcmask 326912
  %v434 = vsel %vm433, %v432, %v430
  %v435 = vadd.s32 %v417, 4294967256
  %v436 = vperm.slane %v249, %v435
  %vm437 = vcmask 392512
  %v438 = vsel %vm437, %v436, %v434
  %v439 = vadd.s32 %v417, 4294967248
  %v440 = vperm.slane %v264, %v439
  %vm441 = vcmask 458112
  %v442 = vsel %vm441, %v440, %v438
  %v443 = vadd.s32 %v417, 4294967240
  %v444 = vperm.slane %v279, %v443
  %vm445 = vcmask 523712
  %v446 = vsel %vm445, %v444, %v442
  %v447 = vadd.s32 %v417, 4294967232
  %v448 = vperm.slane %v294, %v447
  %vm449 = vcmask 589312
  %v450 = vsel %vm449, %v448, %v446
  %v451 = vadd.s32 %v417, 4294967224
  %v452 = vperm.slane %v309, %v451
  %vm453 = vcmask 654912
  %v454 = vsel %vm453, %v452, %v450
  %v455 = vadd.s32 %v417, 4294967216
  %v456 = vperm.slane %v324, %v455
  %vm457 = vcmask 720512
  %v458 = vsel %vm457, %v456, %v454
  %v459 = vadd.s32 %v417, 4294967208
  %v460 = vperm.slane %v339, %v459
  %vm461 = vcmask 786112
  %v462 = vsel %vm461, %v460, %v458
  %v463 = vadd.s32 %v417, 4294967200
  %v464 = vperm.slane %v354, %v463
  %vm465 = vcmask 851712
  %v466 = vsel %vm465, %v464, %v462
  %v467 = vadd.s32 %v417, 4294967192
  %v468 = vperm.slane %v369, %v467
  %vm469 = vcmask 917312
  %v470 = vsel %vm469, %v468, %v466
  %v471 = vadd.s32 %v417, 4294967184
  %v472 = vperm.slane %v384, %v471
  %vm473 = vcmask 982912
  %v474 = vsel %vm473, %v472, %v470
  %v475 = vadd.s32 %v417, 4294967176
  %v476 = vperm.slane %v399, %v475
  %vm477 = vcmask 1048512
  %v478 = vsel %vm477, %v476, %v474
  %480 = vst [vmem:[%s2] sm:$0x1] %v478
  // Predicated region
  $region10: #{single_module_forward.1} parent=0 // pred_check
    _
  $region11: #{single_module_forward.1} parent=0 // pred_check_branch
    %482 = sbr.rel (0) target = $region13
  $region12: #{single_module_forward.1} parent=0 // pred_region
    _
  $region13: #{single_module_forward.1} parent=0 // pred_fallthru
    _
  // Predicated region
  $region14: #{single_module_forward.1} parent=0 // pred_check
    _
  $region15: #{single_module_forward.1} parent=0 // pred_check_branch
    %484 = sbr.rel (0) target = $region17
  $region16: #{single_module_forward.1} parent=0 // pred_region
    _
  $region17: #{single_module_forward.1} parent=0 // pred_fallthru
    _

</llo_original>
